<compile_context>
chip_gen: v6e
topology: v6e:2x2x1
jax: 0.10.0
libtpu: 0.0.40
codegen_flags: <defaults>
</compile_context>

<pallas_src>
import jax
import jax.numpy as jnp
from jax.experimental import pallas as pl
from jax.experimental.pallas import tpu as pltpu


def _simple_baseline_kernel(
    img_ref,         # [BT, C, H*W]     f32  (lane-dense image tile)
    q_ref,           # [BT, S, Dw_in]   f32
    w_imgproj_ref,   # [C, D_img]       bf16 (pre-scaled by 1/(H*W))
    w_word_ref,      # [Dw_in, D_word]  bf16
    w_cls_img_ref,   # [D_img, D_out]   bf16 (classifier weight, image slice)
    w_cls_word_ref,  # [D_word, D_out]  bf16 (classifier weight, word slice)
    b_eff_ref,       # [1, D_out]       f32  (b_cls + b_imgproj@Wci + b_word@Wcw)
    out_ref,         # [BT, D_out]      f32
):
    # ---- image branch: lane-dense sum over H*W (mean folded into w_imgproj)
    pooled = jnp.sum(img_ref[...], axis=-1)                       # [BT, C]  f32

    # ---- question branch: amax over the sequence axis (dim=1)
    q_max = jnp.max(q_ref[...], axis=1)                           # [BT, Dw] f32

    # ---- branch linears on the MXU: bf16 operands, f32 accumulation
    img_feat = jnp.dot(pooled.astype(jnp.bfloat16), w_imgproj_ref[...],
                       preferred_element_type=jnp.float32)        # [BT, D_img]
    word_feat = jnp.dot(q_max.astype(jnp.bfloat16), w_word_ref[...],
                        preferred_element_type=jnp.float32)       # [BT, D_word]

    # ---- classifier over concat([img_feat, word_feat], -1)
    # concat + single matmul == sum of two matmuls against the split weight.
    out = (
        jnp.dot(img_feat.astype(jnp.bfloat16), w_cls_img_ref[...],
                preferred_element_type=jnp.float32)
        + jnp.dot(word_feat.astype(jnp.bfloat16), w_cls_word_ref[...],
                  preferred_element_type=jnp.float32)
        + b_eff_ref[...]
    )                                                             # [BT, D_out]
    out_ref[...] = out.astype(out_ref.dtype)


def simple_baseline_net(image, question_encoding, params, *, batch_tile=8):
    """Fused forward. image: [B,C,H,W] f32; question_encoding: [B,S,Dw_in] f32."""
    B, C, H, W = image.shape
    S, DW = question_encoding.shape[1], question_encoding.shape[2]
    HW = H * W
    d_img = params["w_imgproj"].shape[1]
    d_word = params["w_word"].shape[1]
    d_out = params["b_cls"].shape[-1]

    # ---- one-time host-side folding (zero in-kernel cost)
    w_imgproj_eff = (params["w_imgproj"] * (1.0 / float(HW))).astype(jnp.bfloat16)
    w_word_eff = params["w_word"].astype(jnp.bfloat16)
    w_cls_img_eff = params["w_cls_img"].astype(jnp.bfloat16)
    w_cls_word_eff = params["w_cls_word"].astype(jnp.bfloat16)
    b_eff = (
        params["b_cls"]
        + params["b_imgproj"] @ params["w_cls_img"]
        + params["b_word"] @ params["w_cls_word"]
    ).astype(jnp.float32)                                          # [1, d_out]

    # ---- lane-dense image layout: [B, C, H*W]
    img2d = image.reshape(B, C, HW)

    # ---- pad batch to a multiple of the batch tile, grid over batch
    bt = batch_tile
    pB = -(-B // bt) * bt
    if pB != B:
        pad = pB - B
        img2d = jnp.pad(img2d, ((0, pad), (0, 0), (0, 0)))
        question_encoding = jnp.pad(question_encoding, ((0, pad), (0, 0), (0, 0)))

    grid = (pB // bt,)
    out = pl.pallas_call(
        _simple_baseline_kernel,
        out_shape=jax.ShapeDtypeStruct((pB, d_out), jnp.float32),
        grid=grid,
        in_specs=[
            # batch-blocked activations (double-buffered across grid steps)
            pl.BlockSpec((bt, C, HW), lambda b: (b, 0, 0)),
            pl.BlockSpec((bt, S, DW), lambda b: (b, 0, 0)),
            # weights: constant index maps -> fetched once, VMEM-resident
            pl.BlockSpec((C, d_img), lambda b: (0, 0)),
            pl.BlockSpec((DW, d_word), lambda b: (0, 0)),
            pl.BlockSpec((d_img, d_out), lambda b: (0, 0)),
            pl.BlockSpec((d_word, d_out), lambda b: (0, 0)),
            pl.BlockSpec((1, d_out), lambda b: (0, 0)),
        ],
        out_specs=pl.BlockSpec((bt, d_out), lambda b: (b, 0)),
        compiler_params=pltpu.CompilerParams(
            dimension_semantics=("parallel",),   # shards batch across v7x's 2 TCs
        ),
    )(
        img2d,
        question_encoding,
        w_imgproj_eff,
        w_word_eff,
        w_cls_img_eff,
        w_cls_word_eff,
        b_eff,
    )
    return out[:B]


def init_params(key, c_in, d_img, dw_in, d_word, d_out):
    """Deterministic synthetic parameters (no checkpoint loading). Stored f32;
    the wrapper derives the bf16 / folded forms."""
    ks = jax.random.split(key, 6)
    scale = 0.02
    return {
        # GoogLeNet-tail stand-in: C -> D_img
        "w_imgproj": scale * jax.random.normal(ks[0], (c_in, d_img), jnp.float32),
        "b_imgproj": scale * jax.random.normal(ks[1], (1, d_img), jnp.float32),
        # word_feature_extractor: Dw_in -> D_word
        "w_word": scale * jax.random.normal(ks[2], (dw_in, d_word), jnp.float32),
        "b_word": scale * jax.random.normal(ks[3], (1, d_word), jnp.float32),
        # classifier: (D_img + D_word) -> D_out, stored as two row-slices
        "w_cls_img": scale * jax.random.normal(ks[4], (d_img, d_out), jnp.float32),
        "w_cls_word": scale * jax.random.normal(ks[5], (d_word, d_out), jnp.float32),
        "b_cls": jnp.zeros((1, d_out), jnp.float32),
    }


def reference_forward(image, question_encoding, params):
    """Pure-JAX f32 reference of the same math (un-folded, un-quantized)."""
    pooled = jnp.mean(image, axis=(2, 3))
    img_feat = pooled @ params["w_imgproj"] + params["b_imgproj"]
    q_max = jnp.max(question_encoding, axis=1)
    word_feat = q_max @ params["w_word"] + params["b_word"]
    comb = jnp.concatenate([img_feat, word_feat], axis=-1)
    w_cls = jnp.concatenate([params["w_cls_img"], params["w_cls_word"]], axis=0)
    return comb @ w_cls + params["b_cls"]


if __name__ == "__main__":
    # Small shapes consistent with the module's forward:
    #   image [B, C, H, W], question_encoding [B, S, Dw_in]
    B, C, H, W = 2, 4, 16, 16
    S, DW_IN = 8, 256
    D_IMG, D_WORD, D_OUT = 128, 128, 256     # D_OUT multiple of 128 (lane-dense stores)

    key = jax.random.PRNGKey(0)
    k_img, k_q, k_p = jax.random.split(key, 3)

    image = jax.random.normal(k_img, (B, C, H, W), jnp.float32)
    question_encoding = jax.random.normal(k_q, (B, S, DW_IN), jnp.float32)
    params = init_params(k_p, C, D_IMG, DW_IN, D_WORD, D_OUT)

    out = simple_baseline_net(image, question_encoding, params)
    out = jax.block_until_ready(out)

    ref = reference_forward(image, question_encoding, params)
    assert out.shape == (B, D_OUT), out.shape
    # bf16 weights + f32 accumulation: loosen tolerance vs. the f32 reference.
    assert jnp.allclose(out, ref, atol=1e-2, rtol=1e-2), "mismatch vs reference"

    print("KERNEL_OK")
</pallas_src>

<mosaic_0001>
module attributes {stable_mosaic.version = 11 : i64} {
  func.func @_simple_baseline_kernel(%arg0: i32, %arg1: memref<8x4x256xf32, #tpu.memory_space<vmem>>, %arg2: memref<8x8x256xf32, #tpu.memory_space<vmem>>, %arg3: memref<4x128xbf16, #tpu.memory_space<vmem>>, %arg4: memref<256x128xbf16, #tpu.memory_space<vmem>>, %arg5: memref<128x256xbf16, #tpu.memory_space<vmem>>, %arg6: memref<128x256xbf16, #tpu.memory_space<vmem>>, %arg7: memref<1x256xf32, #tpu.memory_space<vmem>>, %arg8: memref<8x256xf32, #tpu.memory_space<vmem>>) attributes {dimension_semantics = [#tpu.dimension_semantics<parallel>], iteration_bounds = array<i64: 1>, scalar_prefetch = 0 : i64, scratch_operands = 0 : i64, tpu.core_type = #tpu.core_type<tc>, window_params = [{transform_indices = @transform_0, window_bounds = array<i64: 8, 4, 256>}, {transform_indices = @transform_1, window_bounds = array<i64: 8, 8, 256>}, {pipeline_mode = #tpu.pipeline_mode<synchronous>, transform_indices = @transform_2, window_bounds = array<i64: 4, 128>}, {pipeline_mode = #tpu.pipeline_mode<synchronous>, transform_indices = @transform_3, window_bounds = array<i64: 256, 128>}, {pipeline_mode = #tpu.pipeline_mode<synchronous>, transform_indices = @transform_4, window_bounds = array<i64: 128, 256>}, {pipeline_mode = #tpu.pipeline_mode<synchronous>, transform_indices = @transform_5, window_bounds = array<i64: 128, 256>}, {pipeline_mode = #tpu.pipeline_mode<synchronous>, transform_indices = @transform_6, window_bounds = array<i64: 1, 256>}, {transform_indices = @transform_7, window_bounds = array<i64: 8, 256>}]} {
    %c0 = arith.constant 0 : index
    %c0_0 = arith.constant 0 : index
    %c0_1 = arith.constant 0 : index
    %0 = vector.load %arg1[%c0, %c0_0, %c0_1] : memref<8x4x256xf32, #tpu.memory_space<vmem>>, vector<8x4x256xf32>
    %cst = arith.constant dense<0.000000e+00> : vector<8x4xf32>
    %1 = vector.multi_reduction <add>, %0, %cst [2] : vector<8x4x256xf32> to vector<8x4xf32>
    %c0_2 = arith.constant 0 : index
    %c0_3 = arith.constant 0 : index
    %c0_4 = arith.constant 0 : index
    %2 = vector.load %arg2[%c0_2, %c0_3, %c0_4] : memref<8x8x256xf32, #tpu.memory_space<vmem>>, vector<8x8x256xf32>
    %cst_5 = arith.constant dense<0xFF800000> : vector<8x256xf32>
    %3 = vector.multi_reduction <maximumf>, %2, %cst_5 [1] : vector<8x8x256xf32> to vector<8x256xf32>
    %4 = arith.truncf %1 : vector<8x4xf32> to vector<8x4xbf16>
    %c0_6 = arith.constant 0 : index
    %c0_7 = arith.constant 0 : index
    %5 = vector.load %arg3[%c0_6, %c0_7] : memref<4x128xbf16, #tpu.memory_space<vmem>>, vector<4x128xbf16>
    %cst_8 = arith.constant dense<0.000000e+00> : vector<8x128xf32>
    %6 = tpu.matmul %4, %5, %cst_8 {dimension_numbers = #tpu.dot_dimension_numbers<[1], [0], [0], [1], [0, 0, 1, 1], [], []>} : vector<8x4xbf16>, vector<4x128xbf16>, vector<8x128xf32> -> vector<8x128xf32>
    %7 = arith.truncf %3 : vector<8x256xf32> to vector<8x256xbf16>
    %c0_9 = arith.constant 0 : index
    %c0_10 = arith.constant 0 : index
    %8 = vector.load %arg4[%c0_9, %c0_10] : memref<256x128xbf16, #tpu.memory_space<vmem>>, vector<256x128xbf16>
    %cst_11 = arith.constant dense<0.000000e+00> : vector<8x128xf32>
    %9 = tpu.matmul %7, %8, %cst_11 {dimension_numbers = #tpu.dot_dimension_numbers<[1], [0], [0], [1], [0, 0, 1, 1], [], []>} : vector<8x256xbf16>, vector<256x128xbf16>, vector<8x128xf32> -> vector<8x128xf32>
    %10 = arith.truncf %6 : vector<8x128xf32> to vector<8x128xbf16>
    %c0_12 = arith.constant 0 : index
    %c0_13 = arith.constant 0 : index
    %11 = vector.load %arg5[%c0_12, %c0_13] : memref<128x256xbf16, #tpu.memory_space<vmem>>, vector<128x256xbf16>
    %cst_14 = arith.constant dense<0.000000e+00> : vector<8x256xf32>
    %12 = tpu.matmul %10, %11, %cst_14 {dimension_numbers = #tpu.dot_dimension_numbers<[1], [0], [0], [1], [0, 0, 1, 1], [], []>} : vector<8x128xbf16>, vector<128x256xbf16>, vector<8x256xf32> -> vector<8x256xf32>
    %13 = arith.truncf %9 : vector<8x128xf32> to vector<8x128xbf16>
    %c0_15 = arith.constant 0 : index
    %c0_16 = arith.constant 0 : index
    %14 = vector.load %arg6[%c0_15, %c0_16] : memref<128x256xbf16, #tpu.memory_space<vmem>>, vector<128x256xbf16>
    %cst_17 = arith.constant dense<0.000000e+00> : vector<8x256xf32>
    %15 = tpu.matmul %13, %14, %cst_17 {dimension_numbers = #tpu.dot_dimension_numbers<[1], [0], [0], [1], [0, 0, 1, 1], [], []>} : vector<8x128xbf16>, vector<128x256xbf16>, vector<8x256xf32> -> vector<8x256xf32>
    %16 = arith.addf %12, %15 : vector<8x256xf32>
    %c0_18 = arith.constant 0 : index
    %c0_19 = arith.constant 0 : index
    %17 = vector.load %arg7[%c0_18, %c0_19] : memref<1x256xf32, #tpu.memory_space<vmem>>, vector<1x256xf32>
    %18 = vector.broadcast %17 : vector<1x256xf32> to vector<8x256xf32>
    %19 = arith.addf %16, %18 : vector<8x256xf32>
    %c0_20 = arith.constant 0 : index
    %c0_21 = arith.constant 0 : index
    %20 = vector.load %arg8[%c0_20, %c0_21] : memref<8x256xf32, #tpu.memory_space<vmem>>, vector<8x256xf32>
    tpu.vector_store %arg8[%c0_20, %c0_21], %19 {strides = array<i32>} : memref<8x256xf32, #tpu.memory_space<vmem>>, vector<8x256xf32>,
    return
  }
  func.func @transform_0(%arg0: i32) -> (i32, i32, i32) {
    %c0_i32 = arith.constant 0 : i32
    %c0_i32_0 = arith.constant 0 : i32
    %c0_i32_1 = arith.constant 0 : i32
    return %arg0, %c0_i32, %c0_i32_0 : i32, i32, i32
  }
  func.func @transform_1(%arg0: i32) -> (i32, i32, i32) {
    %c0_i32 = arith.constant 0 : i32
    %c0_i32_0 = arith.constant 0 : i32
    %c0_i32_1 = arith.constant 0 : i32
    return %arg0, %c0_i32, %c0_i32_0 : i32, i32, i32
  }
  func.func @transform_2(%arg0: i32) -> (i32, i32) {
    %c0_i32 = arith.constant 0 : i32
    %c0_i32_0 = arith.constant 0 : i32
    %c0_i32_1 = arith.constant 0 : i32
    return %c0_i32, %c0_i32_0 : i32, i32
  }
  func.func @transform_3(%arg0: i32) -> (i32, i32) {
    %c0_i32 = arith.constant 0 : i32
    %c0_i32_0 = arith.constant 0 : i32
    %c0_i32_1 = arith.constant 0 : i32
    return %c0_i32, %c0_i32_0 : i32, i32
  }
  func.func @transform_4(%arg0: i32) -> (i32, i32) {
    %c0_i32 = arith.constant 0 : i32
    %c0_i32_0 = arith.constant 0 : i32
    %c0_i32_1 = arith.constant 0 : i32
    return %c0_i32, %c0_i32_0 : i32, i32
  }
  func.func @transform_5(%arg0: i32) -> (i32, i32) {
    %c0_i32 = arith.constant 0 : i32
    %c0_i32_0 = arith.constant 0 : i32
    %c0_i32_1 = arith.constant 0 : i32
    return %c0_i32, %c0_i32_0 : i32, i32
  }
  func.func @transform_6(%arg0: i32) -> (i32, i32) {
    %c0_i32 = arith.constant 0 : i32
    %c0_i32_0 = arith.constant 0 : i32
    %c0_i32_1 = arith.constant 0 : i32
    return %c0_i32, %c0_i32_0 : i32, i32
  }
  func.func @transform_7(%arg0: i32) -> (i32, i32) {
    %c0_i32 = arith.constant 0 : i32
    %c0_i32_0 = arith.constant 0 : i32
    return %arg0, %c0_i32 : i32, i32
  }
}

</mosaic_0001>

<llo_original>
// kernel: tpu_custom_call.1
$region0: #{tpu_custom_call.1}
  #allocation0 [shape = 'u32[]', space=smem, size = 0x4, offset = 0x4, fixed_abs, tag = 'smem constant byte address 0x4 - core index']
  #allocation1 [shape = 'u32[144,128]{1,0:T(1,128)}', space=vmem, size = 0x12000, scoped, tag = 'internal scratch']
  %s0 = inlined_call_operand.hbm [shape: f32[8,4,256], index: 0, kind: input, shape index: {}]
  %s1 = inlined_call_operand.hbm [shape: f32[8,8,256], index: 1, kind: input, shape index: {}]
  %s2 = inlined_call_operand.vmem [shape: bf16[4,128], index: 2, kind: input, shape index: {}]
  %s3 = inlined_call_operand.hbm [shape: bf16[256,128], index: 3, kind: input, shape index: {}]
  %s4 = inlined_call_operand.hbm [shape: bf16[128,256], index: 4, kind: input, shape index: {}]
  %s5 = inlined_call_operand.hbm [shape: bf16[128,256], index: 5, kind: input, shape index: {}]
  %s6 = inlined_call_operand.vmem [shape: f32[1,256], index: 6, kind: input, shape index: {}]
  %s7 = inlined_call_operand.hbm [shape: f32[8,256], index: 7, kind: output, shape index: {}]
  %s8 = sld [smem:[#allocation0]]
  $region58: #{tpu_custom_call.1} parent=0
    _
  %s10 = ssub.s32 1, %s8
  %s11 = scalar_select 0, %s10, %s8
  $region1: #{tpu_custom_call.1} parent=0
    #allocation2 [shape = 'u8[32768]{0}', space=vmem, size = 0x8000, scoped, tag = 'input window, operand 0, single buffered']
    #allocation3 [shape = 's32[1]{0}', space=sflag, size = 0x4, scoped, tag = 'scoped memory for tpu_custom_call.1']
    #allocation4 [shape = 's32[1]{0}', space=sflag, size = 0x4, scoped, tag = 'scoped memory for tpu_custom_call.1']
    #allocation5 [shape = 'u8[65536]{0}', space=vmem, size = 0x10000, scoped, tag = 'input window, operand 1, single buffered']
    #allocation6 [shape = 's32[1]{0}', space=sflag, size = 0x4, scoped, tag = 'scoped memory for tpu_custom_call.1']
    #allocation7 [shape = 'u8[65536]{0}', space=vmem, size = 0x10000, scoped, tag = 'input window, operand 3, single buffered']
    #allocation8 [shape = 'u8[65536]{0}', space=vmem, size = 0x10000, scoped, tag = 'input window, operand 4, single buffered']
    #allocation9 [shape = 's32[1]{0}', space=sflag, size = 0x4, scoped, tag = 'scoped memory for tpu_custom_call.1']
    #allocation10 [shape = 'u8[65536]{0}', space=vmem, size = 0x10000, scoped, tag = 'input window, operand 5, single buffered']
    #allocation11 [shape = 'u8[8192]{0}', space=vmem, size = 0x2000, scoped, tag = 'output window, operand 0, single buffered']
    %12 = vsyncpa [#allocation3], 0
    %13 = vsyncpa [#allocation6], 0
    %14 = vsyncpa [#allocation9], 0
    %15 = vsyncpa [#allocation4], 0
    // Predicated region
    $region2: #{tpu_custom_call.1} parent=1 // pred_check
      _
    $region3: #{tpu_custom_call.1} parent=1 // pred_check_branch
      %17 = sbr.rel (0) target = $region5
    $region4: #{tpu_custom_call.1} parent=1 // pred_region
      %s19 = ssub.s32 1024, 1024
      %20 = vsyncadd [#allocation3], %s19
      %s21 = sshll.u32 [#allocation2], 4
      %s22 = int_to_ptr.vmem [resolvable:$true] %s21
      %27 = dma.hbm_to_vmem [thread:$0]  %s0, 1024, %s22, [#allocation3], 128, 128, 8
    $region5: #{tpu_custom_call.1} parent=1 // pred_fallthru
      _
    // Predicated region
    $region6: #{tpu_custom_call.1} parent=1 // pred_check
      _
    $region7: #{tpu_custom_call.1} parent=1 // pred_check_branch
      %29 = sbr.rel (0) target = $region9
    $region8: #{tpu_custom_call.1} parent=1 // pred_region
      %s31 = ssub.s32 2048, 2048
      %32 = vsyncadd [#allocation6], %s31
      %s33 = sshll.u32 [#allocation5], 4
      %s34 = int_to_ptr.vmem [resolvable:$true] %s33
      %39 = dma.hbm_to_vmem [thread:$0]  %s1, 2048, %s34, [#allocation6], 256, 256, 16
    $region9: #{tpu_custom_call.1} parent=1 // pred_fallthru
      _
    // Predicated region
    $region10: #{tpu_custom_call.1} parent=1 // pred_check
      _
    $region11: #{tpu_custom_call.1} parent=1 // pred_check_branch
      %41 = sbr.rel (0) target = $region13
    $region12: #{tpu_custom_call.1} parent=1 // pred_region
      _
    $region13: #{tpu_custom_call.1} parent=1 // pred_fallthru
      _
    // Predicated region
    $region14: #{tpu_custom_call.1} parent=1 // pred_check
      _
    $region15: #{tpu_custom_call.1} parent=1 // pred_check_branch
      %43 = sbr.rel (0) target = $region17
    $region16: #{tpu_custom_call.1} parent=1 // pred_region
      %s45 = ssub.s32 2048, 2048
      %46 = vsyncadd [#allocation6], %s45
      %s47 = sshll.u32 [#allocation7], 4
      %s48 = int_to_ptr.vmem [resolvable:$true] %s47
      %53 = dma.hbm_to_vmem [thread:$0]  %s3, 2048, %s48, [#allocation6], 64, 64, 4
    $region17: #{tpu_custom_call.1} parent=1 // pred_fallthru
      _
    // Predicated region
    $region18: #{tpu_custom_call.1} parent=1 // pred_check
      _
    $region19: #{tpu_custom_call.1} parent=1 // pred_check_branch
      %55 = sbr.rel (0) target = $region21
    $region20: #{tpu_custom_call.1} parent=1 // pred_region
      %s57 = ssub.s32 2048, 2048
      %58 = vsyncadd [#allocation9], %s57
      %s59 = sshll.u32 [#allocation8], 4
      %s60 = int_to_ptr.vmem [resolvable:$true] %s59
      %65 = dma.hbm_to_vmem [thread:$0]  %s4, 2048, %s60, [#allocation9], 128, 128, 8
    $region21: #{tpu_custom_call.1} parent=1 // pred_fallthru
      _
    // Predicated region
    $region22: #{tpu_custom_call.1} parent=1 // pred_check
      _
    $region23: #{tpu_custom_call.1} parent=1 // pred_check_branch
      %67 = sbr.rel (0) target = $region25
    $region24: #{tpu_custom_call.1} parent=1 // pred_region
      %s69 = ssub.s32 2048, 2048
      %70 = vsyncadd [#allocation9], %s69
      %s71 = sshll.u32 [#allocation10], 4
      %s72 = int_to_ptr.vmem [resolvable:$true] %s71
      %77 = dma.hbm_to_vmem [thread:$0]  %s5, 2048, %s72, [#allocation9], 128, 128, 8
    $region25: #{tpu_custom_call.1} parent=1 // pred_fallthru
      _
    // Predicated region
    $region26: #{tpu_custom_call.1} parent=1 // pred_check
      _
    $region27: #{tpu_custom_call.1} parent=1 // pred_check_branch
      %79 = sbr.rel (0) target = $region29
    $region28: #{tpu_custom_call.1} parent=1 // pred_region
      _
    $region29: #{tpu_custom_call.1} parent=1 // pred_fallthru
      _
    // Predicated region
    $region30: #{tpu_custom_call.1} parent=1 // pred_check
      _
    $region31: #{tpu_custom_call.1} parent=1 // pred_check_branch
      %81 = sbr.rel (0) target = $region33
    $region32: #{tpu_custom_call.1} parent=1 // pred_region
      %82 = dma.done [#allocation3], 1024
    $region33: #{tpu_custom_call.1} parent=1 // pred_fallthru
      _
    // Predicated region
    $region34: #{tpu_custom_call.1} parent=1 // pred_check
      _
    $region35: #{tpu_custom_call.1} parent=1 // pred_check_branch
      %84 = sbr.rel (0) target = $region37
    $region36: #{tpu_custom_call.1} parent=1 // pred_region
      %85 = dma.done [#allocation6], 2048
    $region37: #{tpu_custom_call.1} parent=1 // pred_fallthru
      _
    // Predicated region
    $region38: #{tpu_custom_call.1} parent=1 // pred_check
      _
    $region39: #{tpu_custom_call.1} parent=1 // pred_check_branch
      %87 = sbr.rel (0) target = $region41
    $region40: #{tpu_custom_call.1} parent=1 // pred_region
      %88 = dma.done [#allocation6], 2048
    $region41: #{tpu_custom_call.1} parent=1 // pred_fallthru
      _
    // Predicated region
    $region42: #{tpu_custom_call.1} parent=1 // pred_check
      _
    $region43: #{tpu_custom_call.1} parent=1 // pred_check_branch
      %90 = sbr.rel (0) target = $region45
    $region44: #{tpu_custom_call.1} parent=1 // pred_region
      %91 = dma.done [#allocation9], 2048
    $region45: #{tpu_custom_call.1} parent=1 // pred_fallthru
      _
    // Predicated region
    $region46: #{tpu_custom_call.1} parent=1 // pred_check
      _
    $region47: #{tpu_custom_call.1} parent=1 // pred_check_branch
      %93 = sbr.rel (0) target = $region49
    $region48: #{tpu_custom_call.1} parent=1 // pred_region
      %94 = dma.done [#allocation9], 2048
    $region49: #{tpu_custom_call.1} parent=1 // pred_fallthru
      _
    %v96 = vld [vmem:[#allocation2] sm:$0xff]
    %v97 = vld [vmem:[#allocation2 + $0x8] sm:$0xff]
    %v98 = vld [vmem:[#allocation2 + $0x10] sm:$0xff]
    %v99 = vld [vmem:[#allocation2 + $0x18] sm:$0xff]
    %v100 = vld [vmem:[#allocation2 + $0x20] sm:$0xff]
    %v101 = vld [vmem:[#allocation2 + $0x28] sm:$0xff]
    %v102 = vld [vmem:[#allocation2 + $0x30] sm:$0xff]
    %v103 = vld [vmem:[#allocation2 + $0x38] sm:$0xff]
    %v112 = vcombine.high %v96, %v96
    %v113 = vcombine.high %v97, %v97
    %v114 = vcombine.high %v98, %v98
    %v115 = vcombine.high %v99, %v99
    %v116 = vcombine.high %v100, %v100
    %v117 = vcombine.high %v101, %v101
    %v118 = vcombine.high %v102, %v102
    %v119 = vcombine.high %v103, %v103
    %vm128 = vcmask 1043456
    %v129 = vsel %vm128, %v96, 0.0
    %v130 = vsel %vm128, %v112, 0.0
    %v131 = vadd.f32 %v129, %v130
    %132 = vadd.xlane.f32.xlu0 %v131
    %v133 = vpop.xlane.xlu0 %132
    %v134 = vsel %vm128, %v97, 0.0
    %v135 = vsel %vm128, %v113, 0.0
    %v136 = vadd.f32 %v134, %v135
    %137 = vadd.xlane.f32.xlu0 %v136
    %v138 = vpop.xlane.xlu0 %137
    %v139 = vsel %vm128, %v98, 0.0
    %v140 = vsel %vm128, %v114, 0.0
    %v141 = vadd.f32 %v139, %v140
    %142 = vadd.xlane.f32.xlu0 %v141
    %v143 = vpop.xlane.xlu0 %142
    %v144 = vsel %vm128, %v99, 0.0
    %v145 = vsel %vm128, %v115, 0.0
    %v146 = vadd.f32 %v144, %v145
    %147 = vadd.xlane.f32.xlu0 %v146
    %v148 = vpop.xlane.xlu0 %147
    %v149 = vsel %vm128, %v100, 0.0
    %v150 = vsel %vm128, %v116, 0.0
    %v151 = vadd.f32 %v149, %v150
    %152 = vadd.xlane.f32.xlu0 %v151
    %v153 = vpop.xlane.xlu0 %152
    %v154 = vsel %vm128, %v101, 0.0
    %v155 = vsel %vm128, %v117, 0.0
    %v156 = vadd.f32 %v154, %v155
    %157 = vadd.xlane.f32.xlu0 %v156
    %v158 = vpop.xlane.xlu0 %157
    %v159 = vsel %vm128, %v102, 0.0
    %v160 = vsel %vm128, %v118, 0.0
    %v161 = vadd.f32 %v159, %v160
    %162 = vadd.xlane.f32.xlu0 %v161
    %v163 = vpop.xlane.xlu0 %162
    %v164 = vsel %vm128, %v103, 0.0
    %v165 = vsel %vm128, %v119, 0.0
    %v166 = vadd.f32 %v164, %v165
    %167 = vadd.xlane.f32.xlu0 %v166
    %v168 = vpop.xlane.xlu0 %167
    %v169 = vld [vmem:[#allocation5] sm:$0xff]
    %v170 = vld [vmem:[#allocation5 + $0x8] sm:$0xff]
    %v171 = vld [vmem:[#allocation5 + $0x10] sm:$0xff]
    %v172 = vld [vmem:[#allocation5 + $0x18] sm:$0xff]
    %v173 = vld [vmem:[#allocation5 + $0x20] sm:$0xff]
    %v174 = vld [vmem:[#allocation5 + $0x28] sm:$0xff]
    %v175 = vld [vmem:[#allocation5 + $0x30] sm:$0xff]
    %v176 = vld [vmem:[#allocation5 + $0x38] sm:$0xff]
    %v177 = vld [vmem:[#allocation5 + $0x40] sm:$0xff]
    %v178 = vld [vmem:[#allocation5 + $0x48] sm:$0xff]
    %v179 = vld [vmem:[#allocation5 + $0x50] sm:$0xff]
    %v180 = vld [vmem:[#allocation5 + $0x58] sm:$0xff]
    %v181 = vld [vmem:[#allocation5 + $0x60] sm:$0xff]
    %v182 = vld [vmem:[#allocation5 + $0x68] sm:$0xff]
    %v183 = vld [vmem:[#allocation5 + $0x70] sm:$0xff]
    %v184 = vld [vmem:[#allocation5 + $0x78] sm:$0xff]
    %v185 = vrot.slane %v169, 4
    %v186 = vmax.f32 %v169, %v185
    %v187 = vrot.slane %v186, 2
    %v188 = vmax.f32 %v186, %v187
    %v189 = vrot.slane %v188, 1
    %v190 = vmax.f32 %v188, %v189
    %v191 = vrot.slane %v170, 4
    %v192 = vmax.f32 %v170, %v191
    %v193 = vrot.slane %v192, 2
    %v194 = vmax.f32 %v192, %v193
    %v195 = vrot.slane %v194, 1
    %v196 = vmax.f32 %v194, %v195
    %v197 = vrot.slane %v171, 4
    %v198 = vmax.f32 %v171, %v197
    %v199 = vrot.slane %v198, 2
    %v200 = vmax.f32 %v198, %v199
    %v201 = vrot.slane %v200, 1
    %v202 = vmax.f32 %v200, %v201
    %v203 = vrot.slane %v172, 4
    %v204 = vmax.f32 %v172, %v203
    %v205 = vrot.slane %v204, 2
    %v206 = vmax.f32 %v204, %v205
    %v207 = vrot.slane %v206, 1
    %v208 = vmax.f32 %v206, %v207
    %v209 = vrot.slane %v173, 4
    %v210 = vmax.f32 %v173, %v209
    %v211 = vrot.slane %v210, 2
    %v212 = vmax.f32 %v210, %v211
    %v213 = vrot.slane %v212, 1
    %v214 = vmax.f32 %v212, %v213
    %v215 = vrot.slane %v174, 4
    %v216 = vmax.f32 %v174, %v215
    %v217 = vrot.slane %v216, 2
    %v218 = vmax.f32 %v216, %v217
    %v219 = vrot.slane %v218, 1
    %v220 = vmax.f32 %v218, %v219
    %v221 = vrot.slane %v175, 4
    %v222 = vmax.f32 %v175, %v221
    %v223 = vrot.slane %v222, 2
    %v224 = vmax.f32 %v222, %v223
    %v225 = vrot.slane %v224, 1
    %v226 = vmax.f32 %v224, %v225
    %v227 = vrot.slane %v176, 4
    %v228 = vmax.f32 %v176, %v227
    %v229 = vrot.slane %v228, 2
    %v230 = vmax.f32 %v228, %v229
    %v231 = vrot.slane %v230, 1
    %v232 = vmax.f32 %v230, %v231
    %v233 = vrot.slane %v177, 4
    %v234 = vmax.f32 %v177, %v233
    %v235 = vrot.slane %v234, 2
    %v236 = vmax.f32 %v234, %v235
    %v237 = vrot.slane %v236, 1
    %v238 = vmax.f32 %v236, %v237
    %v239 = vrot.slane %v178, 4
    %v240 = vmax.f32 %v178, %v239
    %v241 = vrot.slane %v240, 2
    %v242 = vmax.f32 %v240, %v241
    %v243 = vrot.slane %v242, 1
    %v244 = vmax.f32 %v242, %v243
    %v245 = vrot.slane %v179, 4
    %v246 = vmax.f32 %v179, %v245
    %v247 = vrot.slane %v246, 2
    %v248 = vmax.f32 %v246, %v247
    %v249 = vrot.slane %v248, 1
    %v250 = vmax.f32 %v248, %v249
    %v251 = vrot.slane %v180, 4
    %v252 = vmax.f32 %v180, %v251
    %v253 = vrot.slane %v252, 2
    %v254 = vmax.f32 %v252, %v253
    %v255 = vrot.slane %v254, 1
    %v256 = vmax.f32 %v254, %v255
    %v257 = vrot.slane %v181, 4
    %v258 = vmax.f32 %v181, %v257
    %v259 = vrot.slane %v258, 2
    %v260 = vmax.f32 %v258, %v259
    %v261 = vrot.slane %v260, 1
    %v262 = vmax.f32 %v260, %v261
    %v263 = vrot.slane %v182, 4
    %v264 = vmax.f32 %v182, %v263
    %v265 = vrot.slane %v264, 2
    %v266 = vmax.f32 %v264, %v265
    %v267 = vrot.slane %v266, 1
    %v268 = vmax.f32 %v266, %v267
    %v269 = vrot.slane %v183, 4
    %v270 = vmax.f32 %v183, %v269
    %v271 = vrot.slane %v270, 2
    %v272 = vmax.f32 %v270, %v271
    %v273 = vrot.slane %v272, 1
    %v274 = vmax.f32 %v272, %v273
    %v275 = vrot.slane %v184, 4
    %v276 = vmax.f32 %v184, %v275
    %v277 = vrot.slane %v276, 2
    %v278 = vmax.f32 %v276, %v277
    %v279 = vrot.slane %v278, 1
    %v280 = vmax.f32 %v278, %v279
    %v281 = vpack.c.bf16 %v133, %v133
    %v282 = vpack.c.bf16 %v138, %v138
    %v283 = vpack.c.bf16 %v143, %v143
    %v284 = vpack.c.bf16 %v148, %v148
    %v285 = vpack.c.bf16 %v153, %v153
    %v286 = vpack.c.bf16 %v158, %v158
    %v287 = vpack.c.bf16 %v163, %v163
    %v288 = vpack.c.bf16 %v168, %v168
    %v289 = vld [vmem:[%s2] sm:$0x3]
    %v298 = vunpack.c.l.b16 %v281
    %v299 = vunpack.c.l.b16 %v282
    %v300 = vunpack.c.l.b16 %v283
    %v301 = vunpack.c.l.b16 %v284
    %v302 = vunpack.c.l.b16 %v285
    %v303 = vunpack.c.l.b16 %v286
    %v304 = vunpack.c.l.b16 %v287
    %v305 = vunpack.c.l.b16 %v288
    %v306 = vlaneseq
    %v307 = vand.u32 %v306, 127
    %v308 = vlaneseq
    %v309 = vshrl.u32 %v308, 7
    %v310 = vsub.s32 %v307, %v309
    %v311 = vrot.slane %v298, %v310
    %v312 = vlaneseq
    %v313 = vshrl.u32 %v312, 7
    %v314 = vsub.s32 %v307, %v313
    %v315 = vrot.slane %v299, %v314
    %v316 = vlaneseq
    %v317 = vshrl.u32 %v316, 7
    %v318 = vsub.s32 %v307, %v317
    %v319 = vrot.slane %v300, %v318
    %v320 = vlaneseq
    %v321 = vshrl.u32 %v320, 7
    %v322 = vsub.s32 %v307, %v321
    %v323 = vrot.slane %v301, %v322
    %v324 = vlaneseq
    %v325 = vshrl.u32 %v324, 7
    %v326 = vsub.s32 %v307, %v325
    %v327 = vrot.slane %v302, %v326
    %v328 = vlaneseq
    %v329 = vshrl.u32 %v328, 7
    %v330 = vsub.s32 %v307, %v329
    %v331 = vrot.slane %v303, %v330
    %v332 = vlaneseq
    %v333 = vshrl.u32 %v332, 7
    %v334 = vsub.s32 %v307, %v333
    %v335 = vrot.slane %v304, %v334
    %v336 = vlaneseq
    %v337 = vshrl.u32 %v336, 7
    %v338 = vsub.s32 %v307, %v337
    %v339 = vrot.slane %v305, %v338
    %vm340 = vcmask 1041409
    %v341 = vsel %vm340, %v315, %v311
    %vm342 = vcmask 1042434
    %v343 = vsel %vm342, %v319, %v341
    %vm344 = vcmask 1043459
    %v345 = vsel %vm344, %v323, %v343
    %vm346 = vcmask 1044484
    %v347 = vsel %vm346, %v327, %v345
    %vm348 = vcmask 1045509
    %v349 = vsel %vm348, %v331, %v347
    %vm350 = vcmask 1046534
    %v351 = vsel %vm350, %v335, %v349
    %vm352 = vcmask 1047559
    %v353 = vsel %vm352, %v339, %v351
    %v354 = vpack.c.b16 %v353, %v353
    %vm355 = vcmask 31744
    %v357 = vsel %vm355, %v354, 0
    %vm359 = vcmask 1041408
    %v361 = vsel %vm359, %v289, 0
    %363 = vmatprep.subr.bf16.mxu0 0
    %364 = vmatpush1.bf16.msra.mxu0 0
    %365 = vmatprep.subr.bf16.mxu0 0
    %366 = vmatpush1.bf16.msra.mxu0 0
    %367 = vmatprep.subr.bf16.mxu0 0
    %368 = vmatpush1.bf16.msra.mxu0 0
    %369 = vmatprep.subr.bf16.mxu0 0
    %370 = vmatpush1.bf16.msra.mxu0 0
    %371 = vmatprep.subr.bf16.mxu0 0
    %372 = vmatpush1.bf16.msra.mxu0 0
    %373 = vmatprep.subr.bf16.mxu0 0
    %374 = vmatpush1.bf16.msra.mxu0 0
    %375 = vmatprep.subr.bf16.mxu0 0
    %376 = vmatpush1.bf16.msra.mxu0 0
    %377 = vmatprep.subr.bf16.mxu0 0
    %378 = vmatpush1.bf16.msra.mxu0 %v361
    %379 = vmatprep.subr.bf16.mxu0 0
    %380 = vmatpush2.bf16.msra.mxu0 0
    %381 = vmatprep.subr.bf16.mxu0 0
    %382 = vmatpush2.bf16.msra.mxu0 0
    %383 = vmatprep.subr.bf16.mxu0 0
    %384 = vmatpush2.bf16.msra.mxu0 0
    %385 = vmatprep.subr.bf16.mxu0 0
    %386 = vmatpush2.bf16.msra.mxu0 0
    %387 = vmatprep.subr.bf16.mxu0 0
    %388 = vmatpush2.bf16.msra.mxu0 0
    %389 = vmatprep.subr.bf16.mxu0 0
    %390 = vmatpush2.bf16.msra.mxu0 0
    %391 = vmatprep.subr.bf16.mxu0 0
    %392 = vmatpush2.bf16.msra.mxu0 0
    %393 = vmatprep.subr.bf16.mxu0 0
    %394 = vmatpush2.bf16.msra.mxu0 0
    %395 = vmatprep.mubr.bf16.mxu0 0
    %396 = vmatmul.mubr.bf16.gmra.mxu0 %v357
    %v397 = vpop.f32.mrf.mxu0
    %v398 = vadd.f32 0.0, %v397
    %v399 = vpop.f32.mrf.mxu0
    %v400 = vpop.f32.mrf.mxu0
    %v401 = vpop.f32.mrf.mxu0
    %402 = vdwg.mxu0
    %v403 = vpack.c.bf16 %v190, %v190
    %v404 = vpack.c.bf16 %v196, %v196
    %v405 = vpack.c.bf16 %v202, %v202
    %v406 = vpack.c.bf16 %v208, %v208
    %v407 = vpack.c.bf16 %v214, %v214
    %v408 = vpack.c.bf16 %v220, %v220
    %v409 = vpack.c.bf16 %v226, %v226
    %v410 = vpack.c.bf16 %v232, %v232
    %v411 = vpack.c.bf16 %v238, %v238
    %v412 = vpack.c.bf16 %v244, %v244
    %v413 = vpack.c.bf16 %v250, %v250
    %v414 = vpack.c.bf16 %v256, %v256
    %v415 = vpack.c.bf16 %v262, %v262
    %v416 = vpack.c.bf16 %v268, %v268
    %v417 = vpack.c.bf16 %v274, %v274
    %v418 = vpack.c.bf16 %v280, %v280
    %v419 = vld [vmem:[#allocation7] sm:$0xf]
    %v420 = vld [vmem:[#allocation7 + $0x4] sm:$0xf]
    %v421 = vld [vmem:[#allocation7 + $0x8] sm:$0xf]
    %v422 = vld [vmem:[#allocation7 + $0xc] sm:$0xf]
    %v423 = vld [vmem:[#allocation7 + $0x10] sm:$0xf]
    %v424 = vld [vmem:[#allocation7 + $0x14] sm:$0xf]
    %v425 = vld [vmem:[#allocation7 + $0x18] sm:$0xf]
    %v426 = vld [vmem:[#allocation7 + $0x1c] sm:$0xf]
    %v427 = vld [vmem:[#allocation7 + $0x20] sm:$0xf]
    %v428 = vld [vmem:[#allocation7 + $0x24] sm:$0xf]
    %v429 = vld [vmem:[#allocation7 + $0x28] sm:$0xf]
    %v430 = vld [vmem:[#allocation7 + $0x2c] sm:$0xf]
    %v431 = vld [vmem:[#allocation7 + $0x30] sm:$0xf]
    %v432 = vld [vmem:[#allocation7 + $0x34] sm:$0xf]
    %v433 = vld [vmem:[#allocation7 + $0x38] sm:$0xf]
    %v434 = vld [vmem:[#allocation7 + $0x3c] sm:$0xf]
    %v435 = vld [vmem:[#allocation7 + $0x40] sm:$0xf]
    %v436 = vld [vmem:[#allocation7 + $0x44] sm:$0xf]
    %v437 = vld [vmem:[#allocation7 + $0x48] sm:$0xf]
    %v438 = vld [vmem:[#allocation7 + $0x4c] sm:$0xf]
    %v439 = vld [vmem:[#allocation7 + $0x50] sm:$0xf]
    %v440 = vld [vmem:[#allocation7 + $0x54] sm:$0xf]
    %v441 = vld [vmem:[#allocation7 + $0x58] sm:$0xf]
    %v442 = vld [vmem:[#allocation7 + $0x5c] sm:$0xf]
    %v443 = vld [vmem:[#allocation7 + $0x60] sm:$0xf]
    %v444 = vld [vmem:[#allocation7 + $0x64] sm:$0xf]
    %v445 = vld [vmem:[#allocation7 + $0x68] sm:$0xf]
    %v446 = vld [vmem:[#allocation7 + $0x6c] sm:$0xf]
    %v447 = vld [vmem:[#allocation7 + $0x70] sm:$0xf]
    %v448 = vld [vmem:[#allocation7 + $0x74] sm:$0xf]
    %v449 = vld [vmem:[#allocation7 + $0x78] sm:$0xf]
    %v450 = vld [vmem:[#allocation7 + $0x7c] sm:$0xf]
    %v467 = vunpack.c.l.b16 %v403
    %v468 = vunpack.c.l.b16 %v404
    %v469 = vunpack.c.l.b16 %v405
    %v470 = vunpack.c.l.b16 %v406
    %v471 = vunpack.c.l.b16 %v407
    %v472 = vunpack.c.l.b16 %v408
    %v473 = vunpack.c.l.b16 %v409
    %v474 = vunpack.c.l.b16 %v410
    %v475 = vunpack.c.l.b16 %v411
    %v476 = vunpack.c.l.b16 %v412
    %v477 = vunpack.c.l.b16 %v413
    %v478 = vunpack.c.l.b16 %v414
    %v479 = vunpack.c.l.b16 %v415
    %v480 = vunpack.c.l.b16 %v416
    %v481 = vunpack.c.l.b16 %v417
    %v482 = vunpack.c.l.b16 %v418
    %v483 = vsel %vm340, %v469, %v467
    %v484 = vsel %vm342, %v471, %v483
    %v485 = vsel %vm344, %v473, %v484
    %v486 = vsel %vm346, %v475, %v485
    %v487 = vsel %vm348, %v477, %v486
    %v488 = vsel %vm350, %v479, %v487
    %v489 = vsel %vm352, %v481, %v488
    %v490 = vsel %vm340, %v470, %v468
    %v491 = vsel %vm342, %v472, %v490
    %v492 = vsel %vm344, %v474, %v491
    %v493 = vsel %vm346, %v476, %v492
    %v494 = vsel %vm348, %v478, %v493
    %v495 = vsel %vm350, %v480, %v494
    %v496 = vsel %vm352, %v482, %v495
    %v497 = vpack.c.b16 %v489, %v489
    %v498 = vpack.c.b16 %v496, %v496
    %v533 = vunpack.c.l.b16 %v419
    %v534 = vunpack.c.l.b16 %v420
    %v535 = vunpack.c.l.b16 %v421
    %v536 = vunpack.c.l.b16 %v422
    %v537 = vunpack.c.l.b16 %v423
    %v538 = vunpack.c.l.b16 %v424
    %v539 = vunpack.c.l.b16 %v425
    %v540 = vunpack.c.l.b16 %v426
    %v541 = vunpack.c.l.b16 %v427
    %v542 = vunpack.c.l.b16 %v428
    %v543 = vunpack.c.l.b16 %v429
    %v544 = vunpack.c.l.b16 %v430
    %v545 = vunpack.c.l.b16 %v431
    %v546 = vunpack.c.l.b16 %v432
    %v547 = vunpack.c.l.b16 %v433
    %v548 = vunpack.c.l.b16 %v434
    %v549 = vunpack.c.l.b16 %v435
    %v550 = vunpack.c.l.b16 %v436
    %v551 = vunpack.c.l.b16 %v437
    %v552 = vunpack.c.l.b16 %v438
    %v553 = vunpack.c.l.b16 %v439
    %v554 = vunpack.c.l.b16 %v440
    %v555 = vunpack.c.l.b16 %v441
    %v556 = vunpack.c.l.b16 %v442
    %v557 = vunpack.c.l.b16 %v443
    %v558 = vunpack.c.l.b16 %v444
    %v559 = vunpack.c.l.b16 %v445
    %v560 = vunpack.c.l.b16 %v446
    %v561 = vunpack.c.l.b16 %v447
    %v562 = vunpack.c.l.b16 %v448
    %v563 = vunpack.c.l.b16 %v449
    %v564 = vunpack.c.l.b16 %v450
    %v565 = vpack.c.b16 %v534, %v533
    %v566 = vpack.c.b16 %v536, %v535
    %v567 = vpack.c.b16 %v538, %v537
    %v568 = vpack.c.b16 %v540, %v539
    %v569 = vpack.c.b16 %v542, %v541
    %v570 = vpack.c.b16 %v544, %v543
    %v571 = vpack.c.b16 %v546, %v545
    %v572 = vpack.c.b16 %v548, %v547
    %v573 = vpack.c.b16 %v550, %v549
    %v574 = vpack.c.b16 %v552, %v551
    %v575 = vpack.c.b16 %v554, %v553
    %v576 = vpack.c.b16 %v556, %v555
    %v577 = vpack.c.b16 %v558, %v557
    %v578 = vpack.c.b16 %v560, %v559
    %v579 = vpack.c.b16 %v562, %v561
    %v580 = vpack.c.b16 %v564, %v563
    %597 = vmatprep.subr.bf16.mxu0 0
    %598 = vmatpush1.bf16.msra.mxu0 %v572
    %599 = vmatprep.subr.bf16.mxu0 0
    %600 = vmatpush1.bf16.msra.mxu0 %v571
    %601 = vmatprep.subr.bf16.mxu0 0
    %602 = vmatpush1.bf16.msra.mxu0 %v570
    %603 = vmatprep.subr.bf16.mxu0 0
    %604 = vmatpush1.bf16.msra.mxu0 %v569
    %605 = vmatprep.subr.bf16.mxu0 0
    %606 = vmatpush1.bf16.msra.mxu0 %v568
    %607 = vmatprep.subr.bf16.mxu0 0
    %608 = vmatpush1.bf16.msra.mxu0 %v567
    %609 = vmatprep.subr.bf16.mxu0 0
    %610 = vmatpush1.bf16.msra.mxu0 %v566
    %611 = vmatprep.subr.bf16.mxu0 0
    %612 = vmatpush1.bf16.msra.mxu0 %v565
    %613 = vmatprep.subr.bf16.mxu0 0
    %614 = vmatpush2.bf16.msra.mxu0 %v580
    %615 = vmatprep.subr.bf16.mxu0 0
    %616 = vmatpush2.bf16.msra.mxu0 %v579
    %617 = vmatprep.subr.bf16.mxu0 0
    %618 = vmatpush2.bf16.msra.mxu0 %v578
    %619 = vmatprep.subr.bf16.mxu0 0
    %620 = vmatpush2.bf16.msra.mxu0 %v577
    %621 = vmatprep.subr.bf16.mxu0 0
    %622 = vmatpush2.bf16.msra.mxu0 %v576
    %623 = vmatprep.subr.bf16.mxu0 0
    %624 = vmatpush2.bf16.msra.mxu0 %v575
    %625 = vmatprep.subr.bf16.mxu0 0
    %626 = vmatpush2.bf16.msra.mxu0 %v574
    %627 = vmatprep.subr.bf16.mxu0 0
    %628 = vmatpush2.bf16.msra.mxu0 %v573
    %629 = vmatprep.mubr.bf16.mxu0 %v498
    %630 = vmatmul.mubr.bf16.gmra.mxu0 %v497
    %v631 = vpop.f32.mrf.mxu0
    %v632 = vadd.f32 0.0, %v631
    %v633 = vpop.f32.mrf.mxu0
    %v634 = vpop.f32.mrf.mxu0
    %v635 = vpop.f32.mrf.mxu0
    %636 = vdwg.mxu0
    %v637 = vpack.c.bf16 %v398, %v398
    %v638 = vld [vmem:[#allocation8] sm:$0xff]
    %v639 = vld [vmem:[#allocation8 + $0x8] sm:$0xff]
    %v640 = vld [vmem:[#allocation8 + $0x10] sm:$0xff]
    %v641 = vld [vmem:[#allocation8 + $0x18] sm:$0xff]
    %v642 = vld [vmem:[#allocation8 + $0x20] sm:$0xff]
    %v643 = vld [vmem:[#allocation8 + $0x28] sm:$0xff]
    %v644 = vld [vmem:[#allocation8 + $0x30] sm:$0xff]
    %v645 = vld [vmem:[#allocation8 + $0x38] sm:$0xff]
    %v646 = vld [vmem:[#allocation8 + $0x40] sm:$0xff]
    %v647 = vld [vmem:[#allocation8 + $0x48] sm:$0xff]
    %v648 = vld [vmem:[#allocation8 + $0x50] sm:$0xff]
    %v649 = vld [vmem:[#allocation8 + $0x58] sm:$0xff]
    %v650 = vld [vmem:[#allocation8 + $0x60] sm:$0xff]
    %v651 = vld [vmem:[#allocation8 + $0x68] sm:$0xff]
    %v652 = vld [vmem:[#allocation8 + $0x70] sm:$0xff]
    %v653 = vld [vmem:[#allocation8 + $0x78] sm:$0xff]
    %v654 = vpack.c.bf16 %v632, %v632
    %v655 = vld [vmem:[#allocation10] sm:$0xff]
    %v656 = vld [vmem:[#allocation10 + $0x8] sm:$0xff]
    %v657 = vld [vmem:[#allocation10 + $0x10] sm:$0xff]
    %v658 = vld [vmem:[#allocation10 + $0x18] sm:$0xff]
    %v659 = vld [vmem:[#allocation10 + $0x20] sm:$0xff]
    %v660 = vld [vmem:[#allocation10 + $0x28] sm:$0xff]
    %v661 = vld [vmem:[#allocation10 + $0x30] sm:$0xff]
    %v662 = vld [vmem:[#allocation10 + $0x38] sm:$0xff]
    %v663 = vld [vmem:[#allocation10 + $0x40] sm:$0xff]
    %v664 = vld [vmem:[#allocation10 + $0x48] sm:$0xff]
    %v665 = vld [vmem:[#allocation10 + $0x50] sm:$0xff]
    %v666 = vld [vmem:[#allocation10 + $0x58] sm:$0xff]
    %v667 = vld [vmem:[#allocation10 + $0x60] sm:$0xff]
    %v668 = vld [vmem:[#allocation10 + $0x68] sm:$0xff]
    %v669 = vld [vmem:[#allocation10 + $0x70] sm:$0xff]
    %v670 = vld [vmem:[#allocation10 + $0x78] sm:$0xff]
    %v687 = vunpack.c.l.b16 %v655
    %v688 = vunpack.c.h.b16 %v655
    %v689 = vunpack.c.l.b16 %v656
    %v690 = vunpack.c.h.b16 %v656
    %v691 = vunpack.c.l.b16 %v657
    %v692 = vunpack.c.h.b16 %v657
    %v693 = vunpack.c.l.b16 %v658
    %v694 = vunpack.c.h.b16 %v658
    %v695 = vunpack.c.l.b16 %v659
    %v696 = vunpack.c.h.b16 %v659
    %v697 = vunpack.c.l.b16 %v660
    %v698 = vunpack.c.h.b16 %v660
    %v699 = vunpack.c.l.b16 %v661
    %v700 = vunpack.c.h.b16 %v661
    %v701 = vunpack.c.l.b16 %v662
    %v702 = vunpack.c.h.b16 %v662
    %v703 = vunpack.c.l.b16 %v663
    %v704 = vunpack.c.h.b16 %v663
    %v705 = vunpack.c.l.b16 %v664
    %v706 = vunpack.c.h.b16 %v664
    %v707 = vunpack.c.l.b16 %v665
    %v708 = vunpack.c.h.b16 %v665
    %v709 = vunpack.c.l.b16 %v666
    %v710 = vunpack.c.h.b16 %v666
    %v711 = vunpack.c.l.b16 %v667
    %v712 = vunpack.c.h.b16 %v667
    %v713 = vunpack.c.l.b16 %v668
    %v714 = vunpack.c.h.b16 %v668
    %v715 = vunpack.c.l.b16 %v669
    %v716 = vunpack.c.h.b16 %v669
    %v717 = vunpack.c.l.b16 %v670
    %v718 = vunpack.c.h.b16 %v670
    %v719 = vpack.c.b16 %v689, %v687
    %v720 = vpack.c.b16 %v690, %v688
    %v721 = vpack.c.b16 %v693, %v691
    %v722 = vpack.c.b16 %v694, %v692
    %v723 = vpack.c.b16 %v697, %v695
    %v724 = vpack.c.b16 %v698, %v696
    %v725 = vpack.c.b16 %v701, %v699
    %v726 = vpack.c.b16 %v702, %v700
    %v727 = vpack.c.b16 %v705, %v703
    %v728 = vpack.c.b16 %v706, %v704
    %v729 = vpack.c.b16 %v709, %v707
    %v730 = vpack.c.b16 %v710, %v708
    %v731 = vpack.c.b16 %v713, %v711
    %v732 = vpack.c.b16 %v714, %v712
    %v733 = vpack.c.b16 %v717, %v715
    %v734 = vpack.c.b16 %v718, %v716
    %751 = vmatprep.subr.bf16.mxu0 %v734
    %752 = vmatpush1.bf16.msra.mxu0 %v733
    %753 = vmatprep.subr.bf16.mxu0 %v732
    %754 = vmatpush1.bf16.msra.mxu0 %v731
    %755 = vmatprep.subr.bf16.mxu0 %v730
    %756 = vmatpush1.bf16.msra.mxu0 %v729
    %757 = vmatprep.subr.bf16.mxu0 %v728
    %758 = vmatpush1.bf16.msra.mxu0 %v727
    %759 = vmatprep.subr.bf16.mxu0 %v726
    %760 = vmatpush1.bf16.msra.mxu0 %v725
    %761 = vmatprep.subr.bf16.mxu0 %v724
    %762 = vmatpush1.bf16.msra.mxu0 %v723
    %763 = vmatprep.subr.bf16.mxu0 %v722
    %764 = vmatpush1.bf16.msra.mxu0 %v721
    %765 = vmatprep.subr.bf16.mxu0 %v720
    %766 = vmatpush1.bf16.msra.mxu0 %v719
    %767 = vmatprep.subr.bf16.mxu0 0
    %768 = vmatpush2.bf16.msra.mxu0 0
    %769 = vmatprep.subr.bf16.mxu0 0
    %770 = vmatpush2.bf16.msra.mxu0 0
    %771 = vmatprep.subr.bf16.mxu0 0
    %772 = vmatpush2.bf16.msra.mxu0 0
    %773 = vmatprep.subr.bf16.mxu0 0
    %774 = vmatpush2.bf16.msra.mxu0 0
    %775 = vmatprep.subr.bf16.mxu0 0
    %776 = vmatpush2.bf16.msra.mxu0 0
    %777 = vmatprep.subr.bf16.mxu0 0
    %778 = vmatpush2.bf16.msra.mxu0 0
    %779 = vmatprep.subr.bf16.mxu0 0
    %780 = vmatpush2.bf16.msra.mxu0 0
    %781 = vmatprep.subr.bf16.mxu0 0
    %782 = vmatpush2.bf16.msra.mxu0 0
    %783 = vmatprep.mubr.bf16.mxu0 0
    %784 = vmatmul.mubr.bf16.gmra.mxu0 %v654
    %v785 = vpop.f32.mrf.mxu0
    %v786 = vadd.f32 0.0, %v785
    %v787 = vpop.f32.mrf.mxu0
    %v788 = vadd.f32 0.0, %v787
    %v789 = vpop.f32.mrf.mxu0
    %v790 = vpop.f32.mrf.mxu0
    %791 = vdwg.mxu0
    %v808 = vunpack.c.l.b16 %v638
    %v809 = vunpack.c.h.b16 %v638
    %v810 = vunpack.c.l.b16 %v639
    %v811 = vunpack.c.h.b16 %v639
    %v812 = vunpack.c.l.b16 %v640
    %v813 = vunpack.c.h.b16 %v640
    %v814 = vunpack.c.l.b16 %v641
    %v815 = vunpack.c.h.b16 %v641
    %v816 = vunpack.c.l.b16 %v642
    %v817 = vunpack.c.h.b16 %v642
    %v818 = vunpack.c.l.b16 %v643
    %v819 = vunpack.c.h.b16 %v643
    %v820 = vunpack.c.l.b16 %v644
    %v821 = vunpack.c.h.b16 %v644
    %v822 = vunpack.c.l.b16 %v645
    %v823 = vunpack.c.h.b16 %v645
    %v824 = vunpack.c.l.b16 %v646
    %v825 = vunpack.c.h.b16 %v646
    %v826 = vunpack.c.l.b16 %v647
    %v827 = vunpack.c.h.b16 %v647
    %v828 = vunpack.c.l.b16 %v648
    %v829 = vunpack.c.h.b16 %v648
    %v830 = vunpack.c.l.b16 %v649
    %v831 = vunpack.c.h.b16 %v649
    %v832 = vunpack.c.l.b16 %v650
    %v833 = vunpack.c.h.b16 %v650
    %v834 = vunpack.c.l.b16 %v651
    %v835 = vunpack.c.h.b16 %v651
    %v836 = vunpack.c.l.b16 %v652
    %v837 = vunpack.c.h.b16 %v652
    %v838 = vunpack.c.l.b16 %v653
    %v839 = vunpack.c.h.b16 %v653
    %v840 = vpack.c.b16 %v810, %v808
    %v841 = vpack.c.b16 %v811, %v809
    %v842 = vpack.c.b16 %v814, %v812
    %v843 = vpack.c.b16 %v815, %v813
    %v844 = vpack.c.b16 %v818, %v816
    %v845 = vpack.c.b16 %v819, %v817
    %v846 = vpack.c.b16 %v822, %v820
    %v847 = vpack.c.b16 %v823, %v821
    %v848 = vpack.c.b16 %v826, %v824
    %v849 = vpack.c.b16 %v827, %v825
    %v850 = vpack.c.b16 %v830, %v828
    %v851 = vpack.c.b16 %v831, %v829
    %v852 = vpack.c.b16 %v834, %v832
    %v853 = vpack.c.b16 %v835, %v833
    %v854 = vpack.c.b16 %v838, %v836
    %v855 = vpack.c.b16 %v839, %v837
    %872 = vmatprep.subr.bf16.mxu0 %v855
    %873 = vmatpush1.bf16.msra.mxu0 %v854
    %874 = vmatprep.subr.bf16.mxu0 %v853
    %875 = vmatpush1.bf16.msra.mxu0 %v852
    %876 = vmatprep.subr.bf16.mxu0 %v851
    %877 = vmatpush1.bf16.msra.mxu0 %v850
    %878 = vmatprep.subr.bf16.mxu0 %v849
    %879 = vmatpush1.bf16.msra.mxu0 %v848
    %880 = vmatprep.subr.bf16.mxu0 %v847
    %881 = vmatpush1.bf16.msra.mxu0 %v846
    %882 = vmatprep.subr.bf16.mxu0 %v845
    %883 = vmatpush1.bf16.msra.mxu0 %v844
    %884 = vmatprep.subr.bf16.mxu0 %v843
    %885 = vmatpush1.bf16.msra.mxu0 %v842
    %886 = vmatprep.subr.bf16.mxu0 %v841
    %887 = vmatpush1.bf16.msra.mxu0 %v840
    %888 = vmatprep.subr.bf16.mxu0 0
    %889 = vmatpush2.bf16.msra.mxu0 0
    %890 = vmatprep.subr.bf16.mxu0 0
    %891 = vmatpush2.bf16.msra.mxu0 0
    %892 = vmatprep.subr.bf16.mxu0 0
    %893 = vmatpush2.bf16.msra.mxu0 0
    %894 = vmatprep.subr.bf16.mxu0 0
    %895 = vmatpush2.bf16.msra.mxu0 0
    %896 = vmatprep.subr.bf16.mxu0 0
    %897 = vmatpush2.bf16.msra.mxu0 0
    %898 = vmatprep.subr.bf16.mxu0 0
    %899 = vmatpush2.bf16.msra.mxu0 0
    %900 = vmatprep.subr.bf16.mxu0 0
    %901 = vmatpush2.bf16.msra.mxu0 0
    %902 = vmatprep.subr.bf16.mxu0 0
    %903 = vmatpush2.bf16.msra.mxu0 0
    %904 = vmatprep.mubr.bf16.mxu0 0
    %905 = vmatmul.mubr.bf16.gmra.mxu0 %v637
    %v906 = vpop.f32.mrf.mxu0
    %v907 = vadd.f32 %v786, %v906
    %v908 = vpop.f32.mrf.mxu0
    %v909 = vadd.f32 %v788, %v908
    %v910 = vpop.f32.mrf.mxu0
    %v911 = vpop.f32.mrf.mxu0
    %912 = vdwg.mxu0
    %v913 = vld [vmem:[%s6] sm:$0x3]
    %v915 = vlaneseq
    %v916 = vshrl.u32 %v915, 7
    %v917 = vsub.s32 0, %v916
    %v918 = vrot.slane %v913, %v917
    %v919 = vlaneseq
    %v920 = vshrl.u32 %v919, 7
    %v921 = vsub.s32 1, %v920
    %v922 = vrot.slane %v913, %v921
    %v925 = vadd.f32 %v907, %v918
    %v926 = vadd.f32 %v909, %v922
    %927 = vst [vmem:[#allocation11] sm:$0xff] %v925
    %928 = vst [vmem:[#allocation11 + $0x8] sm:$0xff] %v926
    // Predicated region
    $region50: #{tpu_custom_call.1} parent=1 // pred_check
      _
    $region51: #{tpu_custom_call.1} parent=1 // pred_check_branch
      %930 = sbr.rel (0) target = $region53
    $region52: #{tpu_custom_call.1} parent=1 // pred_region
      %s932 = ssub.s32 256, 256
      %933 = vsyncadd [#allocation4], %s932
      %s935 = sshll.u32 [#allocation11], 4
      %s936 = int_to_ptr.vmem [resolvable:$true] %s935
      %938 = dma.vmem_to_hbm [thread:$0]  %s936, 256, %s7, [#allocation4]
    $region53: #{tpu_custom_call.1} parent=1 // pred_fallthru
      _
    // Predicated region
    $region54: #{tpu_custom_call.1} parent=1 // pred_check
      _
    $region55: #{tpu_custom_call.1} parent=1 // pred_check_branch
      %940 = sbr.rel (0) target = $region57
    $region56: #{tpu_custom_call.1} parent=1 // pred_region
      %941 = dma.done [#allocation4], 256
    $region57: #{tpu_custom_call.1} parent=1 // pred_fallthru
      _
    %942 = vsyncpa [#allocation3], 1
    %943 = vsyncpa [#allocation6], 1
    %944 = vsyncpa [#allocation9], 1
    %945 = vsyncpa [#allocation4], 1

</llo_original>
